<compile_context>
chip_gen: v5e
topology: v5e:2x2
jax: 0.10.0
libtpu: 0.0.40
codegen_flags: <defaults>
</compile_context>

<pallas_src>
import jax
import jax.numpy as jnp
from jax import lax
from jax.experimental import pallas as pl
from jax.experimental.pallas import tpu as pltpu

EPS = 0.1            # label_smoothing epsilon (module default)
NUM_BOX_COLS = 5     # box(4) + objectness(1); class scores start at column 5
LANES = 128


# -----------------------------------------------------------------------------
# Fused kernel: label smoothing + class-score scaling of the visible detections
# and pass-through of the lwir detections, written directly into the concatenated
# output.  All arrays are the row-major flattening of [B, N, D] viewed as
# [B, rows, 128].
# -----------------------------------------------------------------------------
def _make_fused_kernel(d, tile_rows, nt_vis):
    def kernel(score_ref, vis_ref, lwir_ref, out_ref):
        # score_ref : SMEM [B, K]              raw aware probabilities (pre-smoothing)
        # vis_ref   : VMEM [1, tile_rows, 128] visible tile (clamped on lwir steps)
        # lwir_ref  : VMEM [1, tile_rows, 128] lwir tile (clamped on visible steps)
        # out_ref   : VMEM [1, tile_rows, 128] tile of the concatenated output
        b = pl.program_id(0)
        j = pl.program_id(1)

        @pl.when(j < nt_vis)
        def _scale_visible():
            k = score_ref.shape[1]
            # label smoothing (module-owned); column 0 weights the visible modality
            s = (1.0 - EPS) * score_ref[b, 0] + EPS / k
            # flat element index -> detection column; columns >= 5 are class scores.
            row = lax.broadcasted_iota(jnp.int32, vis_ref.shape, 1)
            lane = lax.broadcasted_iota(jnp.int32, vis_ref.shape, 2)
            col = ((j * tile_rows + row) * LANES + lane) % d
            scale = jnp.where(col >= NUM_BOX_COLS, s, 1.0).astype(vis_ref.dtype)
            out_ref[...] = vis_ref[...] * scale

        @pl.when(j >= nt_vis)
        def _copy_lwir():
            out_ref[...] = lwir_ref[...]

    return kernel


def _fused_scale_concat(vis3, lwir3, aware_probs, tile_rows, d):
    b, rv, _ = vis3.shape
    _, rl, _ = lwir3.shape
    nt_vis = rv // tile_rows                    # exact: tile_rows divides rv
    nt_lwir = pl.cdiv(rl, tile_rows)
    return pl.pallas_call(
        _make_fused_kernel(d, tile_rows, nt_vis),
        out_shape=jax.ShapeDtypeStruct((b, rv + rl, LANES), vis3.dtype),
        grid=(b, nt_vis + nt_lwir),
        in_specs=[
            pl.BlockSpec(memory_space=pltpu.SMEM),                      # aware [B, K]
            # clamped index maps: the unused modality's block index does not change,
            # so it is not re-fetched on the steps that do not use it.
            pl.BlockSpec((1, tile_rows, LANES),
                         lambda bi, j: (bi, jnp.minimum(j, nt_vis - 1), 0)),
            pl.BlockSpec((1, tile_rows, LANES),
                         lambda bi, j: (bi, jnp.maximum(j - nt_vis, 0), 0)),
        ],
        out_specs=pl.BlockSpec((1, tile_rows, LANES), lambda bi, j: (bi, j, 0)),
        compiler_params=pltpu.CompilerParams(
            dimension_semantics=("parallel", "parallel"),
            vmem_limit_bytes=32 * 1024 * 1024),
    )(aware_probs, vis3, lwir3)


# -----------------------------------------------------------------------------
# Fallback for shapes where the flat modality boundary is not 128/8-aligned:
# bounded anchor-row tiles (never a full-extent block) + XLA concat.
# -----------------------------------------------------------------------------
def _make_anchor_scale_kernel():
    def kernel(score_ref, vis_ref, out_ref):
        b = pl.program_id(0)
        k = score_ref.shape[1]
        s = (1.0 - EPS) * score_ref[b, 0] + EPS / k
        col = lax.broadcasted_iota(jnp.int32, vis_ref.shape, 2)
        scale = jnp.where(col >= NUM_BOX_COLS, s, 1.0).astype(vis_ref.dtype)
        out_ref[...] = vis_ref[...] * scale
    return kernel


def _scale_visible_anchor_tiled(inf_out_visible, aware_probs, tile_anchors):
    b, nv, d = inf_out_visible.shape
    return pl.pallas_call(
        _make_anchor_scale_kernel(),
        out_shape=jax.ShapeDtypeStruct((b, nv, d), inf_out_visible.dtype),
        grid=(b, pl.cdiv(nv, tile_anchors)),
        in_specs=[
            pl.BlockSpec(memory_space=pltpu.SMEM),
            pl.BlockSpec((1, tile_anchors, d), lambda bi, j: (bi, j, 0)),
        ],
        out_specs=pl.BlockSpec((1, tile_anchors, d), lambda bi, j: (bi, j, 0)),
        compiler_params=pltpu.CompilerParams(
            dimension_semantics=("parallel", "parallel"),
            vmem_limit_bytes=32 * 1024 * 1024),
    )(aware_probs, inf_out_visible)


# -----------------------------------------------------------------------------
# Tile selection
# -----------------------------------------------------------------------------
def _pick_fused_tile_rows(fv, fl, cap_elems, min_vis_tiles=4):
    """Rows-of-128 per block for the fused kernel, or None if shapes don't align."""
    if fv % LANES or fl % LANES:
        return None
    rv = fv // LANES
    if rv % 8:
        return None
    cap_rows = max(8, (cap_elems // LANES) // 8 * 8)          # ~1 MB f32 default cap
    target_rows = max(8, (rv // min_vis_tiles) // 8 * 8)      # >=4 visible tiles/batch
    tr = max(8, min(cap_rows, target_rows, rv))
    tr -= tr % 8
    tr = max(tr, 8)
    while rv % tr:            # keep the visible/lwir boundary tile-aligned
        tr -= 8
    return tr


def _pick_anchor_tile(nv, d, itemsize, cap_bytes=1 << 20, min_tiles=8):
    """Bounded anchor-row tile (multiple of 8) for the unaligned fallback path."""
    cap_rows = max(8, (cap_bytes // max(d * itemsize, 1)) // 8 * 8)
    target = max(8, ((nv + min_tiles - 1) // min_tiles + 7) // 8 * 8)
    return max(8, min(cap_rows, target))


# -----------------------------------------------------------------------------
# Module forward (aware=True, export_flag=False path)
# -----------------------------------------------------------------------------
def modal_ensemble_forward(inf_out_visible, inf_out_lwir, img_aware,
                           w_aware, b_aware, *, tile_cap_elems=256 * 1024):
    # --- external sub-model surrogate ----------------------------------------
    # TODO(synk): model_aware is an externally loaded AwareModel checkpoint with no
    # in-module architecture; a linear classifier + softmax stands in for it and runs
    # in plain XLA (a Pallas kernel around a [B,F]x[F,2] matmul is pure launch/HBM
    # overhead for a 2-wide MXU output).
    bsz = img_aware.shape[0]
    img_flat = img_aware.reshape(bsz, -1)
    aware_probs = jax.nn.softmax(img_flat @ w_aware + b_aware, axis=-1)
    aware_probs = aware_probs.astype(jnp.float32)

    _, nv, d = inf_out_visible.shape
    _, nl, _ = inf_out_lwir.shape
    fv, fl = nv * d, nl * d

    tile_rows = _pick_fused_tile_rows(fv, fl, tile_cap_elems)
    if tile_rows is not None:
        # Fused path: free row-major reshape to lane-dense [B, F/128, 128]; the kernel
        # scales the visible tiles and copies the lwir tiles straight into the
        # concatenated output (no transpose, no separate XLA concat).
        vis3 = inf_out_visible.reshape(bsz, fv // LANES, LANES)
        lwir3 = inf_out_lwir.reshape(bsz, fl // LANES, LANES)
        out3 = _fused_scale_concat(vis3, lwir3, aware_probs, tile_rows, d)
        return out3.reshape(bsz, nv + nl, d)

    # Unaligned-shape fallback: bounded anchor tiles (never full-extent); the untouched
    # lwir tensor never enters the kernel and XLA lays out the concat.
    ta = _pick_anchor_tile(nv, d, inf_out_visible.dtype.itemsize)
    scaled = _scale_visible_anchor_tiled(inf_out_visible, aware_probs, ta)
    return jnp.concatenate([scaled, inf_out_lwir], axis=1)


if __name__ == "__main__":
    key = jax.random.PRNGKey(0)
    B, C, H, W = 2, 3, 16, 16     # aware-model input (stand-in for the 3x128x128 resize)
    nc = 3                        # num classes
    D = 5 + nc                    # box(4) + obj(1) + class scores(nc)
    Nv, Nl = 512, 384             # anchors per modality
    K = 2                         # aware classifier outputs

    k1, k2, k3, k4, k5 = jax.random.split(key, 5)
    img_aware = jax.random.uniform(k1, (B, C, H, W), jnp.float32)
    # TODO(synk): model_visible / model_lwir are externally loaded YOLOv5 checkpoints
    # (attempt_load) with no in-module definition; stand in for their inference outputs.
    inf_out_visible = jax.random.uniform(k2, (B, Nv, D), jnp.float32)
    inf_out_lwir = jax.random.uniform(k3, (B, Nl, D), jnp.float32)

    # deterministic surrogate aware-model parameters
    F = C * H * W
    w_aware = jax.random.normal(k4, (F, K), jnp.float32) * 0.02
    b_aware = jax.random.normal(k5, (1, K), jnp.float32) * 0.02

    fwd = jax.jit(modal_ensemble_forward, static_argnames=("tile_cap_elems",))
    out = fwd(inf_out_visible, inf_out_lwir, img_aware, w_aware, b_aware)
    out = jax.block_until_ready(out)

    # pure-JAX reference
    img_flat = img_aware.reshape(B, F)
    probs = jax.nn.softmax(img_flat @ w_aware + b_aware, axis=-1)
    score = (1.0 - EPS) * probs + EPS / K
    vis_ref = inf_out_visible.at[:, :, NUM_BOX_COLS:].multiply(
        score[:, 0][:, None, None])
    ref = jnp.concatenate([vis_ref, inf_out_lwir], axis=1)

    assert out.shape == (B, Nv + Nl, D)
    assert jnp.allclose(out, ref, atol=1e-5, rtol=1e-5)
    print("KERNEL_OK")
</pallas_src>

<mosaic_0001>
module attributes {stable_mosaic.version = 11 : i64} {
  func.func @kernel(%arg0: i32, %arg1: i32, %arg2: memref<2x2xf32, #tpu.memory_space<smem>>, %arg3: memref<1x8x128xf32, #tpu.memory_space<vmem>>, %arg4: memref<1x8x128xf32, #tpu.memory_space<vmem>>, %arg5: memref<1x8x128xf32, #tpu.memory_space<vmem>>) attributes {dimension_semantics = [#tpu.dimension_semantics<parallel>, #tpu.dimension_semantics<parallel>], iteration_bounds = array<i64: 2, 7>, scalar_prefetch = 0 : i64, scratch_operands = 0 : i64, tpu.core_type = #tpu.core_type<tc>, window_params = [{transform_indices = @transform_0, window_bounds = array<i64: 2, 2>}, {transform_indices = @transform_1, window_bounds = array<i64: 1, 8, 128>}, {transform_indices = @transform_2, window_bounds = array<i64: 1, 8, 128>}, {transform_indices = @transform_3, window_bounds = array<i64: 1, 8, 128>}]} {
    %c4_i32 = arith.constant 4 : i32
    %0 = arith.cmpi slt, %arg1, %c4_i32 : i32
    %1 = arith.extui %0 : i1 to i32
    %c0_i32 = arith.constant 0 : i32
    %2 = arith.cmpi ne, %1, %c0_i32 : i32
    scf.if %2 {
      %6 = arith.index_cast %arg0 : i32 to index
      %c0 = arith.constant 0 : index
      %7 = memref.load %arg2[%6, %c0] : memref<2x2xf32, #tpu.memory_space<smem>>
      %cst = arith.constant 0.899999976 : f32
      %8 = arith.mulf %cst, %7 : f32
      %cst_2 = arith.constant 5.000000e-02 : f32
      %9 = arith.addf %8, %cst_2 : f32
      %10 = tpu.iota {dimensions = array<i32: 1>} : vector<1x8x128xi32>
      %11 = tpu.iota {dimensions = array<i32: 2>} : vector<1x8x128xi32>
      %c8_i32 = arith.constant 8 : i32
      %12 = arith.muli %arg1, %c8_i32 : i32
      %13 = vector.broadcast %12 : i32 to vector<1x8x128xi32>
      %14 = arith.addi %13, %10 : vector<1x8x128xi32>
      %c128_i32 = arith.constant 128 : i32
      %15 = vector.broadcast %c128_i32 : i32 to vector<1x8x128xi32>
      %16 = arith.muli %14, %15 : vector<1x8x128xi32>
      %17 = arith.addi %16, %11 : vector<1x8x128xi32>
      %c8_i32_3 = arith.constant 8 : i32
      %c0_i32_4 = arith.constant 0 : i32
      %18 = arith.cmpi eq, %c8_i32_3, %c0_i32_4 : i32
      %c1_i32 = arith.constant 1 : i32
      %19 = arith.select %18, %c1_i32, %c8_i32_3 : i32
      %20 = vector.broadcast %19 : i32 to vector<1x8x128xi32>
      %21 = arith.remsi %17, %20 : vector<1x8x128xi32>
      %c0_i32_5 = arith.constant 0 : i32
      %22 = vector.broadcast %c0_i32_5 : i32 to vector<1x8x128xi32>
      %23 = arith.cmpi ne, %21, %22 : vector<1x8x128xi32>
      %c0_i32_6 = arith.constant 0 : i32
      %24 = vector.broadcast %c0_i32_6 : i32 to vector<1x8x128xi32>
      %25 = arith.cmpi slt, %21, %24 : vector<1x8x128xi32>
      %c0_i32_7 = arith.constant 0 : i32
      %26 = arith.cmpi slt, %19, %c0_i32_7 : i32
      %27 = vector.broadcast %26 : i1 to vector<1x8x128xi1>
      %28 = vector.broadcast %27 : vector<1x8x128xi1> to vector<1x8x128xi1>
      %29 = arith.xori %25, %28 : vector<1x8x128xi1>
      %30 = arith.andi %29, %23 : vector<1x8x128xi1>
      %31 = vector.broadcast %19 : i32 to vector<1x8x128xi32>
      %32 = arith.addi %21, %31 : vector<1x8x128xi32>
      %33 = arith.select %30, %32, %21 : vector<1x8x128xi1>, vector<1x8x128xi32>
      %c5_i32 = arith.constant 5 : i32
      %34 = vector.broadcast %c5_i32 : i32 to vector<1x8x128xi32>
      %35 = arith.cmpi sge, %33, %34 : vector<1x8x128xi32>
      %cst_8 = arith.constant 1.000000e+00 : f32
      %36 = vector.broadcast %9 : f32 to vector<1x8x128xf32>
      %37 = vector.broadcast %cst_8 : f32 to vector<1x8x128xf32>
      %38 = arith.select %35, %36, %37 : vector<1x8x128xi1>, vector<1x8x128xf32>
      %c0_9 = arith.constant 0 : index
      %c0_10 = arith.constant 0 : index
      %c0_11 = arith.constant 0 : index
      %39 = vector.load %arg3[%c0_9, %c0_10, %c0_11] : memref<1x8x128xf32, #tpu.memory_space<vmem>>, vector<1x8x128xf32>
      %40 = arith.mulf %39, %38 : vector<1x8x128xf32>
      %c0_12 = arith.constant 0 : index
      %c0_13 = arith.constant 0 : index
      %c0_14 = arith.constant 0 : index
      %41 = vector.load %arg5[%c0_12, %c0_13, %c0_14] : memref<1x8x128xf32, #tpu.memory_space<vmem>>, vector<1x8x128xf32>
      tpu.vector_store %arg5[%c0_12, %c0_13, %c0_14], %40 {strides = array<i32>} : memref<1x8x128xf32, #tpu.memory_space<vmem>>, vector<1x8x128xf32>,
    } else {
    }
    %c4_i32_0 = arith.constant 4 : i32
    %3 = arith.cmpi sge, %arg1, %c4_i32_0 : i32
    %4 = arith.extui %3 : i1 to i32
    %c0_i32_1 = arith.constant 0 : i32
    %5 = arith.cmpi ne, %4, %c0_i32_1 : i32
    scf.if %5 {
      %c0 = arith.constant 0 : index
      %c0_2 = arith.constant 0 : index
      %c0_3 = arith.constant 0 : index
      %6 = vector.load %arg4[%c0, %c0_2, %c0_3] : memref<1x8x128xf32, #tpu.memory_space<vmem>>, vector<1x8x128xf32>
      %c0_4 = arith.constant 0 : index
      %c0_5 = arith.constant 0 : index
      %c0_6 = arith.constant 0 : index
      %7 = vector.load %arg5[%c0_4, %c0_5, %c0_6] : memref<1x8x128xf32, #tpu.memory_space<vmem>>, vector<1x8x128xf32>
      tpu.vector_store %arg5[%c0_4, %c0_5, %c0_6], %6 {strides = array<i32>} : memref<1x8x128xf32, #tpu.memory_space<vmem>>, vector<1x8x128xf32>,
    } else {
    }
    return
  }
  func.func @transform_0(%arg0: i32, %arg1: i32) -> (i32, i32) {
    %c0_i32 = arith.constant 0 : i32
    %c0_i32_0 = arith.constant 0 : i32
    %c0_i32_1 = arith.constant 0 : i32
    return %c0_i32, %c0_i32_0 : i32, i32
  }
  func.func @transform_1(%arg0: i32, %arg1: i32) -> (i32, i32, i32) {
    %c3_i32 = arith.constant 3 : i32
    %0 = arith.minsi %arg1, %c3_i32 : i32
    %c0_i32 = arith.constant 0 : i32
    %c0_i32_0 = arith.constant 0 : i32
    return %arg0, %0, %c0_i32 : i32, i32, i32
  }
  func.func @transform_2(%arg0: i32, %arg1: i32) -> (i32, i32, i32) {
    %c4_i32 = arith.constant 4 : i32
    %0 = arith.subi %arg1, %c4_i32 : i32
    %c0_i32 = arith.constant 0 : i32
    %1 = arith.maxsi %0, %c0_i32 : i32
    %c0_i32_0 = arith.constant 0 : i32
    %c0_i32_1 = arith.constant 0 : i32
    return %arg0, %1, %c0_i32_0 : i32, i32, i32
  }
  func.func @transform_3(%arg0: i32, %arg1: i32) -> (i32, i32, i32) {
    %c0_i32 = arith.constant 0 : i32
    %c0_i32_0 = arith.constant 0 : i32
    return %arg0, %arg1, %c0_i32 : i32, i32, i32
  }
}

</mosaic_0001>

<llo_original>
// kernel: modal_ensemble_forward.1
$region0: #{modal_ensemble_forward.1}
  #allocation0 [shape = 'u32[]', space=smem, size = 0x4, offset = 0x4, fixed_abs, tag = 'smem constant byte address 0x4 - core index']
  #allocation1 [shape = 'u32[72,128]{1,0:T(1,128)}', space=vmem, size = 0x9000, scoped, tag = 'internal scratch']
  %s0 = inlined_call_operand.vmem [shape: f32[2,2], index: 0, kind: input, shape index: {}]
  %s1 = inlined_call_operand.vmem [shape: f32[2,32,128], index: 1, kind: input, shape index: {}]
  %s2 = inlined_call_operand.vmem [shape: f32[2,24,128], index: 2, kind: input, shape index: {}]
  %s3 = inlined_call_operand.vmem [shape: f32[2,56,128], index: 3, kind: output, shape index: {}]
  %s4 = sld [smem:[#allocation0]]
  $region57: #{modal_ensemble_forward.1} parent=0
    _
  %s6 = ssub.s32 1, %s4
  %s7 = scalar_select 0, %s6, %s4
  $region1: #{modal_ensemble_forward.1} parent=0
    #allocation2 [shape = 'u8[1024]{0}', space=smem, size = 0x400, scoped, tag = 'input window, operand 0, single buffered']
    #allocation3 [shape = 's32[2]{0}', space=sflag, size = 0x8, scoped, tag = 'scoped memory for modal_ensemble_forward.1']
    %8 = vsyncpa [#allocation3], 0
    loop: start=0, step=1, limit=16
    $region2: #{modal_ensemble_forward.1} parent=1 // loop_pre_header
      _
    $region3: #{modal_ensemble_forward.1} parent=1 // loop_header
      %s10 = sphi 0, %s14
      %p11 = scmp.ge.s32.totalorder %s10, 16
      %s17 = sphi 0, %s29
      %s18 = sphi 0, %s25
      %s19 = sphi 0, %s17
      %s20 = sphi 0, %s18
      %s21 = sphi 0, %s19
      %s22 = sphi 0, %s20
      %s30 = sphi 0, %s30
      %s32 = sphi 0, %s30
      %s33 = sphi 0, %s32
      %s47 = sphi 0, %s33
      %s59 = sphi 0, %s61
      %s62 = sphi 0, %s59
      %s63 = sphi 0, %s62
      %s79 = sphi 0, %s63
      %s93 = sphi 0, %s95
      %s96 = sphi 0, %s93
      %s97 = sphi 0, %s96
      %s113 = sphi 0, %s97
      %s121 = sphi 0, %s123
      %s124 = sphi 0, %s121
      %s125 = sphi 0, %s124
      %s141 = sphi 0, %s125
    $region4: #{modal_ensemble_forward.1} parent=1 // loop_header_branch
      %13 = sbr.rel (%p11) target = $region8
    $region5: #{modal_ensemble_forward.1} parent=1 // loop_body
      %s15 = ssub.s32 %s10, 1
      %s16 = ssub.s32 %s10, 2
      %s23 = sadd.s32 1, %s18
      %p24 = scmp.ge.s32.totalorder %s23, 7
      %s25 = scalar_select %p24, 0, %s23
      %s26 = sadd.s32 1, %s17
      %s27 = scalar_select %p24, %s26, %s17
      %p28 = scmp.ge.s32.totalorder %s27, 2
      %s29 = scalar_select %p28, 0, %s27
      %s31 = sadd.s32 %s30, 1
      %p34 = scmp.eq.s32.totalorder %s10, 13
      %p35 = scmp.ne.s32.totalorder %s30, %s32
      %p36 = scmp.eq.s32.totalorder %s10, 0
      %p37 = por %p35, %p36
      %p38 = scmp.ne.s32.totalorder %s30, %s32
      %p39 = scmp.eq.s32.totalorder %s15, 13
      %p40 = por %p38, %p39
      %p41 = scmp.ne.s32.totalorder %s32, %s33
      %p42 = scmp.eq.s32.totalorder %s15, 0
      %p43 = por %p41, %p42
      %p44 = scmp.ne.s32.totalorder %s32, %s33
      %p45 = scmp.eq.s32.totalorder %s16, 13
      %p46 = por %p44, %p45
      %p48 = scmp.ne.s32.totalorder %s33, %s47
      %p49 = scmp.eq.s32.totalorder %s16, 0
      %p50 = por %p48, %p49
      %p51 = scmp.lt.s32.totalorder %s18, 3
      %s52 = scalar_select %p51, %s18, 3
      %p53 = scmp.lt.s32.totalorder %s25, 3
      %s54 = scalar_select %p53, %s25, 3
      %s55 = ssub.s32 %s17, %s29
      %s56 = ssub.s32 %s52, %s54
      %s57 = sor.u32 %s55, %s56
      %p58 = scmp.eq.s32.totalorder %s57, 0
      %s60 = sadd.s32 %s59, 1
      %s61 = scalar_select %p58, %s59, %s60
      %p64 = pneg %p58
      %p65 = scmp.eq.s32.totalorder %s10, 13
      %p66 = por %p64, %p65
      %p67 = scmp.ne.s32.totalorder %s59, %s62
      %p68 = scmp.eq.s32.totalorder %s10, 0
      %p69 = por %p67, %p68
      %p70 = scmp.ne.s32.totalorder %s59, %s62
      %p71 = scmp.eq.s32.totalorder %s15, 13
      %p72 = por %p70, %p71
      %p73 = scmp.ne.s32.totalorder %s62, %s63
      %p74 = scmp.eq.s32.totalorder %s15, 0
      %p75 = por %p73, %p74
      %p76 = scmp.ne.s32.totalorder %s62, %s63
      %p77 = scmp.eq.s32.totalorder %s16, 13
      %p78 = por %p76, %p77
      %p80 = scmp.ne.s32.totalorder %s63, %s79
      %p81 = scmp.eq.s32.totalorder %s16, 0
      %p82 = por %p80, %p81
      %s83 = ssub.s32 %s18, 4
      %p84 = scmp.gt.s32.totalorder %s83, 0
      %s85 = scalar_select %p84, %s83, 0
      %s86 = ssub.s32 %s25, 4
      %p87 = scmp.gt.s32.totalorder %s86, 0
      %s88 = scalar_select %p87, %s86, 0
      %s89 = ssub.s32 %s17, %s29
      %s90 = ssub.s32 %s85, %s88
      %s91 = sor.u32 %s89, %s90
      %p92 = scmp.eq.s32.totalorder %s91, 0
      %s94 = sadd.s32 %s93, 1
      %s95 = scalar_select %p92, %s93, %s94
      %p98 = pneg %p92
      %p99 = scmp.eq.s32.totalorder %s10, 13
      %p100 = por %p98, %p99
      %p101 = scmp.ne.s32.totalorder %s93, %s96
      %p102 = scmp.eq.s32.totalorder %s10, 0
      %p103 = por %p101, %p102
      %p104 = scmp.ne.s32.totalorder %s93, %s96
      %p105 = scmp.eq.s32.totalorder %s15, 13
      %p106 = por %p104, %p105
      %p107 = scmp.ne.s32.totalorder %s96, %s97
      %p108 = scmp.eq.s32.totalorder %s15, 0
      %p109 = por %p107, %p108
      %p110 = scmp.ne.s32.totalorder %s96, %s97
      %p111 = scmp.eq.s32.totalorder %s16, 13
      %p112 = por %p110, %p111
      %p114 = scmp.ne.s32.totalorder %s97, %s113
      %p115 = scmp.eq.s32.totalorder %s16, 0
      %p116 = por %p114, %p115
      %s117 = ssub.s32 %s17, %s29
      %s118 = ssub.s32 %s18, %s25
      %s119 = sor.u32 %s117, %s118
      %p120 = scmp.eq.s32.totalorder %s119, 0
      %s122 = sadd.s32 %s121, 1
      %s123 = scalar_select %p120, %s121, %s122
      %p126 = pneg %p120
      %p127 = scmp.eq.s32.totalorder %s10, 13
      %p128 = por %p126, %p127
      %p129 = scmp.ne.s32.totalorder %s121, %s124
      %p130 = scmp.eq.s32.totalorder %s10, 0
      %p131 = por %p129, %p130
      %p132 = scmp.ne.s32.totalorder %s121, %s124
      %p133 = scmp.eq.s32.totalorder %s15, 13
      %p134 = por %p132, %p133
      %p135 = scmp.ne.s32.totalorder %s124, %s125
      %p136 = scmp.eq.s32.totalorder %s15, 0
      %p137 = por %p135, %p136
      %p138 = scmp.ne.s32.totalorder %s124, %s125
      %p139 = scmp.eq.s32.totalorder %s16, 13
      %p140 = por %p138, %p139
      %p142 = scmp.ne.s32.totalorder %s125, %s141
      %p143 = scmp.eq.s32.totalorder %s16, 0
      %p144 = por %p142, %p143
      %p145 = scmp.le.s32.totalorder 1, %s10
      %p146 = scmp.lt.s32.totalorder %s10, 15
      %p147 = pnand %p145, %p146
      %p148 = pneg %p147
      // Predicated region
      $region9: #{modal_ensemble_forward.1} parent=5 // pred_check
        _
      $region10: #{modal_ensemble_forward.1} parent=5 // pred_check_branch
        %150 = sbr.rel (%p147) target = $region12
      $region11: #{modal_ensemble_forward.1} parent=5 // pred_region
        %s151 = ssub.s32 %s10, 1
        // Predicated region
        $region13: #{modal_ensemble_forward.1} parent=11 // pred_check
          %p152 = pneg %p43
        $region14: #{modal_ensemble_forward.1} parent=11 // pred_check_branch
          %154 = sbr.rel (%p152) target = $region16
        $region15: #{modal_ensemble_forward.1} parent=11 // pred_region
          %156 = vsyncadd [#allocation3], 0
          %s158 = sshll.u32 %s0, 4
          %s159 = int_to_ptr.vmem [resolvable:$true] %s158
          %161 = dma.vmem_to_smem %s159, 32, [#allocation2], [#allocation3]
        $region16: #{modal_ensemble_forward.1} parent=11 // pred_fallthru
          _
      $region12: #{modal_ensemble_forward.1} parent=5 // pred_fallthru
        _
      %p162 = scmp.lt.s32.totalorder %s10, 14
      // Predicated region
      $region17: #{modal_ensemble_forward.1} parent=5 // pred_check
        %p163 = pneg %p162
      $region18: #{modal_ensemble_forward.1} parent=5 // pred_check_branch
        %165 = sbr.rel (%p163) target = $region20
      $region19: #{modal_ensemble_forward.1} parent=5 // pred_region
        // Predicated region
        $region21: #{modal_ensemble_forward.1} parent=19 // pred_check
          %p166 = pneg %p69
        $region22: #{modal_ensemble_forward.1} parent=19 // pred_check_branch
          %168 = sbr.rel (%p166) target = $region24
        $region23: #{modal_ensemble_forward.1} parent=19 // pred_region
          %p169 = scmp.lt.s32.totalorder %s18, 3
          %s170 = scalar_select %p169, %s18, 3
          %p171 = scmp.lt.s32.totalorder %s17, 1
          %s172 = scalar_select %p171, %s17, 1
          %p173 = scmp.lt.s32.totalorder %s170, 3
          %s174 = scalar_select %p173, %s170, 3
          %s175 = smul.addr %s172, 4
          %s176 = sadd.s32 %s174, %s175
          %s177 = smul.addr %s176, 8
          %s178 = scalar_lea.vmem %s1, %s177
          %p179 = scmp.lt.s32.totalorder %s18, 3
          %s180 = scalar_select %p179, %s18, 3
        $region24: #{modal_ensemble_forward.1} parent=19 // pred_fallthru
          _
        // Predicated region
        $region25: #{modal_ensemble_forward.1} parent=19 // pred_check
          %p181 = pneg %p103
        $region26: #{modal_ensemble_forward.1} parent=19 // pred_check_branch
          %183 = sbr.rel (%p181) target = $region28
        $region27: #{modal_ensemble_forward.1} parent=19 // pred_region
          %s184 = ssub.s32 %s18, 4
          %p185 = scmp.gt.s32.totalorder %s184, 0
          %s186 = scalar_select %p185, %s184, 0
          %p187 = scmp.lt.s32.totalorder %s17, 1
          %s188 = scalar_select %p187, %s17, 1
          %p189 = scmp.lt.s32.totalorder %s186, 2
          %s190 = scalar_select %p189, %s186, 2
          %s191 = smul.addr %s188, 3
          %s192 = sadd.s32 %s190, %s191
          %s193 = smul.addr %s192, 8
          %s194 = scalar_lea.vmem %s2, %s193
          %s195 = ssub.s32 %s18, 4
          %p196 = scmp.gt.s32.totalorder %s195, 0
          %s197 = scalar_select %p196, %s195, 0
        $region28: #{modal_ensemble_forward.1} parent=19 // pred_fallthru
          _
      $region20: #{modal_ensemble_forward.1} parent=5 // pred_fallthru
        _
      %p198 = scmp.le.s32.totalorder 1, %s10
      %p199 = scmp.lt.s32.totalorder %s10, 15
      %p200 = pnand %p198, %p199
      %p201 = pneg %p200
      // Predicated region
      $region29: #{modal_ensemble_forward.1} parent=5 // pred_check
        _
      $region30: #{modal_ensemble_forward.1} parent=5 // pred_check_branch
        %203 = sbr.rel (%p200) target = $region32
      $region31: #{modal_ensemble_forward.1} parent=5 // pred_region
        %s204 = ssub.s32 %s10, 1
        // Predicated region
        $region33: #{modal_ensemble_forward.1} parent=31 // pred_check
          %p205 = pneg %p43
        $region34: #{modal_ensemble_forward.1} parent=31 // pred_check_branch
          %207 = sbr.rel (%p205) target = $region36
        $region35: #{modal_ensemble_forward.1} parent=31 // pred_region
          %209 = dma.done [#allocation3], 32
        $region36: #{modal_ensemble_forward.1} parent=31 // pred_fallthru
          _
        %210 = sfence
        %p211 = pneg %p43
        %p212 = pneg %p40
        %p213 = scmp.lt.s32.totalorder %s20, 3
        %s214 = scalar_select %p213, %s20, 3
        %p215 = scmp.lt.s32.totalorder %s19, 1
        %s216 = scalar_select %p215, %s19, 1
        %p217 = scmp.lt.s32.totalorder %s214, 3
        %s218 = scalar_select %p217, %s214, 3
        %s219 = smul.addr %s216, 4
        %s220 = sadd.s32 %s218, %s219
        %s221 = smul.addr %s220, 8
        %s222 = scalar_lea.vmem %s1, %s221
        %p223 = pneg %p75
        %p224 = pneg %p72
        %s225 = ssub.s32 %s20, 4
        %p226 = scmp.gt.s32.totalorder %s225, 0
        %s227 = scalar_select %p226, %s225, 0
        %p228 = scmp.lt.s32.totalorder %s19, 1
        %s229 = scalar_select %p228, %s19, 1
        %p230 = scmp.lt.s32.totalorder %s227, 2
        %s231 = scalar_select %p230, %s227, 2
        %s232 = smul.addr %s229, 3
        %s233 = sadd.s32 %s231, %s232
        %s234 = smul.addr %s233, 8
        %s235 = scalar_lea.vmem %s2, %s234
        %p236 = pneg %p109
        %p237 = pneg %p106
        %p238 = pneg %p137
        %p239 = pneg %p134
        %p240 = scmp.lt.s32.totalorder %s19, 1
        %s241 = scalar_select %p240, %s19, 1
        %p242 = scmp.lt.s32.totalorder %s20, 6
        %s243 = scalar_select %p242, %s20, 6
        %s244 = smul.addr %s241, 7
        %s245 = sadd.s32 %s243, %s244
        %s246 = smul.addr %s245, 8
        %s247 = scalar_lea.vmem %s3, %s246
        %p248 = scmp.lt.s32.totalorder %s20, 3
        %s249 = scalar_select %p248, %s20, 3
        %p250 = scmp.lt.s32.totalorder %s19, 1
        %s251 = scalar_select %p250, %s19, 1
        %p252 = scmp.lt.s32.totalorder %s249, 3
        %s253 = scalar_select %p252, %s249, 3
        %s254 = smul.addr %s251, 4
        %s255 = sadd.s32 %s253, %s254
        %s256 = smul.addr %s255, 8
        %s257 = scalar_lea.vmem %s1, %s256
        %p258 = scmp.lt.s32.totalorder %s20, 3
        %s259 = scalar_select %p258, %s20, 3
        %s260 = ssub.s32 %s20, 4
        %p261 = scmp.gt.s32.totalorder %s260, 0
        %s262 = scalar_select %p261, %s260, 0
        %p263 = scmp.lt.s32.totalorder %s19, 1
        %s264 = scalar_select %p263, %s19, 1
        %p265 = scmp.lt.s32.totalorder %s262, 2
        %s266 = scalar_select %p265, %s262, 2
        %s267 = smul.addr %s264, 3
        %s268 = sadd.s32 %s266, %s267
        %s269 = smul.addr %s268, 8
        %s270 = scalar_lea.vmem %s2, %s269
        %s271 = ssub.s32 %s20, 4
        %p272 = scmp.gt.s32.totalorder %s271, 0
        %s273 = scalar_select %p272, %s271, 0
        %p274 = scmp.lt.s32.totalorder %s19, 1
        %s275 = scalar_select %p274, %s19, 1
        %p276 = scmp.lt.s32.totalorder %s20, 6
        %s277 = scalar_select %p276, %s20, 6
        %s278 = smul.addr %s275, 7
        %s279 = sadd.s32 %s277, %s278
        %s280 = smul.addr %s279, 8
        %s281 = scalar_lea.vmem %s3, %s280
        %p282 = scmp.lt.s32.totalorder %s20, 4
        // Predicated region
        $region37: #{modal_ensemble_forward.1} parent=31 // pred_check
          %p283 = pneg %p282
        $region38: #{modal_ensemble_forward.1} parent=31 // pred_check_branch
          %285 = sbr.rel (%p283) target = $region40
        $region39: #{modal_ensemble_forward.1} parent=31 // pred_region
          %s286 = smul.u32 %s19, 128
          %s287 = sld [smem:[#allocation2 + %s286]]
          %s288 = smul.f32 %s287, 0.9
          %s289 = sadd.f32 %s288, 0.05
          %v290 = vlaneseq
          %v291 = vshrl.u32 %v290, 7
          %v292 = vlaneseq
          %v293 = vand.u32 %v292, 127
          %s294 = smul.u32 %s20, 8
          %v295 = vstv %s294
          %v296 = vadd.s32 %v295, %v291
          %v297 = vmul.u32 %v296, 128
          %v298 = vadd.s32 %v297, %v293
          %vm299 = vcmp.lt.s32.totalorder %v298, 0
          %v300 = vsub.s32 0, %v298
          %v301 = vsel %vm299, %v300, %v298
          %v302 = vshrl.u32 %v301, 3
          %v303 = vand.u32 %v301, 7
          %v304 = vsub.s32 0, %v303
          %v305 = vsel %vm299, %v304, %v303
          %vm306 = vcmp.ne.s32.totalorder %v305, 0
          %vm307 = vcmp.lt.s32.totalorder %v305, 0
          %vm308 = vmand %vm307, %vm306
          %v309 = vadd.s32 %v305, 8
          %v310 = vsel %vm308, %v309, %v305
          %vm311 = vcmp.ge.s32.totalorder %v310, 5
          %v312 = vstv %s289
          %v313 = vsel %vm311, %v312, 1.0
          %v314 = vld [vmem:[%s257] sm:$0xff]
          %v315 = vmul.f32 %v314, %v313
          %316 = vst [vmem:[%s281] sm:$0xff] %v315
        $region40: #{modal_ensemble_forward.1} parent=31 // pred_fallthru
          _
        %p317 = scmp.ge.s32.totalorder %s20, 4
        // Predicated region
        $region41: #{modal_ensemble_forward.1} parent=31 // pred_check
          %p318 = pneg %p317
        $region42: #{modal_ensemble_forward.1} parent=31 // pred_check_branch
          %320 = sbr.rel (%p318) target = $region44
        $region43: #{modal_ensemble_forward.1} parent=31 // pred_region
          %v321 = vld [vmem:[%s270] sm:$0xff]
          %322 = vst [vmem:[%s281] sm:$0xff] %v321
        $region44: #{modal_ensemble_forward.1} parent=31 // pred_fallthru
          _
        %p323 = scmp.lt.s32.totalorder %s19, 1
        %s324 = scalar_select %p323, %s19, 1
        %p325 = scmp.lt.s32.totalorder %s20, 6
        %s326 = scalar_select %p325, %s20, 6
        %s327 = smul.addr %s324, 7
        %s328 = sadd.s32 %s326, %s327
        %s329 = smul.addr %s328, 8
        %s330 = scalar_lea.vmem %s3, %s329
        // Predicated region
        $region45: #{modal_ensemble_forward.1} parent=31 // pred_check
          %p331 = pneg %p134
        $region46: #{modal_ensemble_forward.1} parent=31 // pred_check_branch
          %333 = sbr.rel (%p331) target = $region48
        $region47: #{modal_ensemble_forward.1} parent=31 // pred_region
          _
        $region48: #{modal_ensemble_forward.1} parent=31 // pred_fallthru
          _
      $region32: #{modal_ensemble_forward.1} parent=5 // pred_fallthru
        _
      %p334 = scmp.le.s32.totalorder 2, %s10
      // Predicated region
      $region49: #{modal_ensemble_forward.1} parent=5 // pred_check
        %p335 = pneg %p334
      $region50: #{modal_ensemble_forward.1} parent=5 // pred_check_branch
        %337 = sbr.rel (%p335) target = $region52
      $region51: #{modal_ensemble_forward.1} parent=5 // pred_region
        %s338 = ssub.s32 %s10, 2
        // Predicated region
        $region53: #{modal_ensemble_forward.1} parent=51 // pred_check
          %p339 = pneg %p140
        $region54: #{modal_ensemble_forward.1} parent=51 // pred_check_branch
          %341 = sbr.rel (%p339) target = $region56
        $region55: #{modal_ensemble_forward.1} parent=51 // pred_region
          %p342 = scmp.lt.s32.totalorder %s21, 1
          %s343 = scalar_select %p342, %s21, 1
          %p344 = scmp.lt.s32.totalorder %s22, 6
          %s345 = scalar_select %p344, %s22, 6
          %s346 = smul.addr %s343, 7
          %s347 = sadd.s32 %s345, %s346
          %s348 = smul.addr %s347, 8
          %s349 = scalar_lea.vmem %s3, %s348
        $region56: #{modal_ensemble_forward.1} parent=51 // pred_fallthru
          _
      $region52: #{modal_ensemble_forward.1} parent=5 // pred_fallthru
        _
    $region6: #{modal_ensemble_forward.1} parent=1 // loop_footer
      %s14 = sadd.s32 1, %s10
    $region7: #{modal_ensemble_forward.1} parent=1 // loop_footer_branch
      %9 = sbr.rel target = $region3
    $region8: #{modal_ensemble_forward.1} parent=1 // loop_exit
      _
    %350 = vsyncpa [#allocation3], 1
    %s351 = scalar_lea.sflag [#allocation3], 1
    %352 = vsyncpa %s351, 1

</llo_original>
